<compile_context>
chip_gen: v5e
topology: v5e:2x2
jax: 0.10.0
libtpu: 0.0.40
codegen_flags: <defaults>
</compile_context>

<pallas_src>
import functools

import jax
import jax.numpy as jnp
from jax.experimental import pallas as pl
from jax.experimental.pallas import tpu as pltpu


def _round_up(x, m):
    return (x + m - 1) // m * m


# Only single-buffer the VMEM-resident slabs when the saved copy is meaningful.
_SINGLE_BUFFER_SLAB_BYTES = 4 * 1024 * 1024


# ----------------------------- Pallas kernel ------------------------------ #
def _critic_kernel(x_ref, a_ref, w_ref, vec_ref, out_ref, *,
                   d_in_p, n_act_p, fc1, fc2, fc1_p, fc2_p):
    eps = 1e-5                      # torch.nn.LayerNorm default
    f32 = jnp.float32
    mm_dtype = w_ref.dtype          # bf16 (default) or f32 MXU operands

    x = x_ref[...]                  # (TB, d_in_p)   matmul dtype
    a = a_ref[...]                  # (TB, n_act_p)  matmul dtype

    # Static slices into the packed weight slab (row offsets are 128-aligned,
    # so these are layout-clean for bf16 sublane packing too).
    w1 = w_ref[0:d_in_p, 0:fc1_p]
    w2 = w_ref[d_in_p:d_in_p + fc1_p, 0:fc2_p]
    wa = w_ref[d_in_p + fc1_p:d_in_p + fc1_p + n_act_p, 0:fc2_p]

    # Static slices into the packed (9, vec_w) f32 vector slab.
    b1 = vec_ref[0:1, 0:fc1_p]
    g1 = vec_ref[1:2, 0:fc1_p]
    beta1 = vec_ref[2:3, 0:fc1_p]
    b2 = vec_ref[3:4, 0:fc2_p]
    g2 = vec_ref[4:5, 0:fc2_p]
    beta2 = vec_ref[5:6, 0:fc2_p]
    ba = vec_ref[6:7, 0:fc2_p]
    wq = vec_ref[7:8, 0:fc2_p]      # q-head weight, transposed to a row
    bq = vec_ref[8:9, 0:1]          # q-head bias (scalar)

    def layer_norm(v, width, width_p, g, beta):
        # Padded lanes of v are exactly zero (zero-padded weights/bias), so the
        # sum over all lanes equals the sum over the true width.
        inv_n = 1.0 / width
        mu = jnp.sum(v, axis=-1, keepdims=True) * inv_n
        c = v - mu                                     # two-pass variance
        if width != width_p:                           # mask padded lanes out
            mask = jax.lax.broadcasted_iota(jnp.int32, (1, width_p), 1) < width
            cm = jnp.where(mask, c, 0.0)
        else:
            cm = c
        var = jnp.sum(cm * cm, axis=-1, keepdims=True) * inv_n
        # Padded lanes: g == beta == 0 there, so the output stays exactly zero.
        return c * jax.lax.rsqrt(var + eps) * g + beta

    # --- fc1 -> LayerNorm -> ReLU --------------------------------------------
    h = jnp.dot(x, w1, preferred_element_type=f32) + b1
    h = jnp.maximum(layer_norm(h, fc1, fc1_p, g1, beta1), 0.0)

    # --- fc2 -> LayerNorm ------------------------------------------------------
    s = jnp.dot(h.astype(mm_dtype), w2, preferred_element_type=f32) + b2
    s = layer_norm(s, fc2, fc2_p, g2, beta2)

    # --- action branch ---------------------------------------------------------
    av = jnp.maximum(jnp.dot(a, wa, preferred_element_type=f32) + ba, 0.0)

    # --- combine + q head (VPU mul + XLU reduce; no N=1 MXU matmul) -----------
    sa = jnp.maximum(s + av, 0.0)
    q = jnp.sum(sa * wq, axis=-1)                    # (TB,)
    # Lane-dense (1, TB) store; the sublane->lane relayout here is one XLU op
    # per grid step amortized over tb rows (flagged for benchmarking vs (tb,1)).
    out_ref[...] = q.reshape(1, -1) + bq


# ------------------------- Packed parameter slabs --------------------------- #
@jax.tree_util.register_pytree_node_class
class PackedCriticParams:
    """Pre-packed weight/vector slabs. Build ONCE per parameter update and reuse
    across forward calls (hoists all pad/concat HBM traffic out of forward)."""

    def __init__(self, w_slab, vec_slab, dims):
        self.w_slab = w_slab            # (d_in_p+fc1_p+n_act_p, vec_w) matmul dtype
        self.vec_slab = vec_slab        # (9, vec_w) float32
        self.dims = dims                # static ints (see pack_params)

    def tree_flatten(self):
        return (self.w_slab, self.vec_slab), self.dims

    @classmethod
    def tree_unflatten(cls, dims, children):
        return cls(children[0], children[1], dims)


def pack_params(params, *, matmul_dtype=jnp.bfloat16):
    """Pack weights into one slab (stacked on the contraction axis) and all
    small vectors (biases, LN gamma/beta, wq^T, bq) into one (9, W) f32 slab."""
    d_in, fc1 = params["w1"].shape
    n_act, fc2_a = params["wa"].shape
    fc1_b, fc2 = params["w2"].shape
    assert fc1_b == fc1 and fc2_a == fc2

    # Pad every MXU-facing dim to a multiple of 128 (lane width). Zero rows/cols
    # contribute nothing to the dot products; padded lanes stay exactly zero.
    fc1_p = _round_up(fc1, 128)
    fc2_p = _round_up(fc2, 128)
    d_in_p = _round_up(d_in, 128)
    n_act_p = _round_up(n_act, 128)
    vec_w = max(fc1_p, fc2_p)

    w1 = jnp.pad(jnp.asarray(params["w1"], jnp.float32),
                 ((0, d_in_p - d_in), (0, vec_w - fc1)))
    w2 = jnp.pad(jnp.asarray(params["w2"], jnp.float32),
                 ((0, fc1_p - fc1), (0, vec_w - fc2)))
    wa = jnp.pad(jnp.asarray(params["wa"], jnp.float32),
                 ((0, n_act_p - n_act), (0, vec_w - fc2)))
    w_slab = jnp.concatenate([w1, w2, wa], axis=0).astype(matmul_dtype)

    def _row(v, width):
        v = jnp.asarray(v, jnp.float32).reshape(1, -1)
        return jnp.pad(v, ((0, 0), (0, vec_w - width)))

    vec_slab = jnp.concatenate([
        _row(params["b1"], fc1), _row(params["g1"], fc1), _row(params["beta1"], fc1),
        _row(params["b2"], fc2), _row(params["g2"], fc2), _row(params["beta2"], fc2),
        _row(params["ba"], fc2), _row(params["wq"].reshape(1, -1), fc2),
        _row(params["bq"], 1),
    ], axis=0)                                                # (9, vec_w) float32

    dims = (d_in, n_act, fc1, fc2, d_in_p, n_act_p, fc1_p, fc2_p, vec_w)
    return PackedCriticParams(w_slab, vec_slab, dims)


# ------------------------------- Wrapper ----------------------------------- #
def critic_forward(state, action, packed):
    """state: (B, C, H, W); action: (B, n_actions); packed: PackedCriticParams.
    Returns squeeze(q). Jit-friendly (PackedCriticParams is a registered pytree)."""
    d_in, n_act, fc1, fc2, d_in_p, n_act_p, fc1_p, fc2_p, vec_w = packed.dims
    w_slab, vec_slab = packed.w_slab, packed.vec_slab
    mm_dtype = w_slab.dtype
    itemsize = jnp.dtype(mm_dtype).itemsize

    B = state.shape[0]
    x = state.reshape(B, -1).astype(jnp.float32)             # nn.Flatten()
    assert x.shape[1] == d_in, (x.shape, d_in)
    a = action.reshape(-1, n_act).astype(jnp.float32)        # .view(-1, n_actions)

    # Batch tiling: sublane-pack-aligned single tile for small B; 256-row tiles
    # for large B (amortizes per-step overhead, keeps >=2 parallel grid steps
    # for B>256 so both v7x TensorCores are used).
    sub = max(8, 32 // itemsize)                 # 8 rows (f32) / 16 rows (bf16)
    if B <= 256:
        b_pad = _round_up(B, sub)
        tb = b_pad
    else:
        tb = 256
        b_pad = _round_up(B, tb)

    x = jnp.pad(x, ((0, b_pad - B), (0, d_in_p - d_in))).astype(mm_dtype)
    a = jnp.pad(a, ((0, b_pad - a.shape[0]), (0, n_act_p - n_act))).astype(mm_dtype)

    kernel = functools.partial(_critic_kernel, d_in_p=d_in_p, n_act_p=n_act_p,
                               fc1=fc1, fc2=fc2, fc1_p=fc1_p, fc2_p=fc2_p)

    # Constant-index slabs stay VMEM-resident across grid steps; single-buffer
    # them only when large enough for the saved copy to matter.
    slab_bytes = w_slab.size * itemsize + vec_slab.size * 4
    single_buffer_slabs = slab_bytes >= _SINGLE_BUFFER_SLAB_BYTES
    slab_bufs = 1 if single_buffer_slabs else 2

    def _slab_spec(shape):
        if single_buffer_slabs:
            return pl.BlockSpec(shape, lambda i: (0, 0), pipeline_mode=pl.Buffered(1))
        return pl.BlockSpec(shape, lambda i: (0, 0))

    # Explicit scoped-VMEM budget (default is 16 MiB on v5e / 32 MiB on v6e+v7x).
    need = (2 * tb * d_in_p * itemsize                       # x tile (double-buffered)
            + 2 * tb * n_act_p * itemsize                    # a tile
            + slab_bufs * w_slab.size * itemsize             # weight slab
            + slab_bufs * 16 * vec_w * 4                     # vector slab (sublane-padded)
            + 2 * tb * 128 * 4                               # output tile
            + 8 * tb * max(fc1_p, fc2_p) * 4                 # f32 intermediates headroom
            + (4 << 20))                                     # fixed headroom
    vmem_limit = int(min(max(need, 16 << 20), 120 << 20))
    # TODO(synk): for very large flattened d_in (image states) the resident w_slab
    # can exceed v7x's 64 MiB VMEM; that case needs a K-tiled grid axis over d_in
    # with an f32 accumulator scratch (pl.when init/finalize) instead of a
    # monolithic VMEM-resident slab.

    out = pl.pallas_call(
        kernel,
        out_shape=jax.ShapeDtypeStruct((1, b_pad), jnp.float32),
        grid=(b_pad // tb,),
        in_specs=[
            pl.BlockSpec((tb, d_in_p), lambda i: (i, 0)),    # state tile
            pl.BlockSpec((tb, n_act_p), lambda i: (i, 0)),   # action tile
            _slab_spec(w_slab.shape),                        # weights, VMEM-resident
            _slab_spec(vec_slab.shape),                      # vectors, VMEM-resident
        ],
        out_specs=pl.BlockSpec((1, tb), lambda i: (0, i)),   # lane-dense q
        compiler_params=pltpu.CompilerParams(
            dimension_semantics=("parallel",),
            vmem_limit_bytes=vmem_limit),
    )(x, a, w_slab, vec_slab)

    return jnp.squeeze(out[0, :B])          # torch: state_action_value.squeeze()


# --------------------------- Parameter creation ----------------------------- #
def init_params(key, input_dims, fc1_dims, fc2_dims, n_actions):
    """Mirrors the torch __init__ (weights stored pre-transposed as (in, out)).
    Note: torch only re-inits fc2.weight with f2; fc2.bias keeps the default
    U(+-1/sqrt(fan_in=fc1_dims)) init — reproduced here (init-only detail)."""
    ks = jax.random.split(key, 8)

    def uni(k, shape, bound):
        return jax.random.uniform(k, shape, jnp.float32, -bound, bound)

    f1 = 1.0 / jnp.sqrt(fc1_dims)            # fc1.weight.size(0) == fc1_dims
    w1 = uni(ks[0], (input_dims, fc1_dims), f1)
    b1 = uni(ks[1], (1, fc1_dims), f1)

    f2 = 1.0 / jnp.sqrt(fc2_dims)            # fc2.weight.size(0) == fc2_dims
    w2 = uni(ks[2], (fc1_dims, fc2_dims), f2)
    b2 = uni(ks[3], (1, fc2_dims), 1.0 / jnp.sqrt(fc1_dims))   # torch default bias init

    fa = 1.0 / jnp.sqrt(n_actions)           # default torch Linear init
    wa = uni(ks[4], (n_actions, fc2_dims), fa)
    ba = uni(ks[5], (1, fc2_dims), fa)

    f3 = 0.003
    wq = uni(ks[6], (fc2_dims, 1), f3)
    bq = uni(ks[7], (1, 1), f3)

    return {
        "w1": w1, "b1": b1,
        "g1": jnp.ones((1, fc1_dims), jnp.float32),
        "beta1": jnp.zeros((1, fc1_dims), jnp.float32),
        "w2": w2, "b2": b2,
        "g2": jnp.ones((1, fc2_dims), jnp.float32),
        "beta2": jnp.zeros((1, fc2_dims), jnp.float32),
        "wa": wa, "ba": ba,
        "wq": wq, "bq": bq,
    }


# ----------------------- Pure-JAX reference (sanity) ------------------------ #
def critic_reference(state, action, p, matmul_dtype=jnp.float32):
    eps = 1e-5
    x = state.reshape(state.shape[0], -1).astype(jnp.float32)
    a = action.reshape(-1, p["wa"].shape[0]).astype(jnp.float32)

    def mm(u, w):
        return jnp.dot(u.astype(matmul_dtype), w.astype(matmul_dtype),
                       preferred_element_type=jnp.float32)

    h = mm(x, p["w1"]) + p["b1"]
    mu = h.mean(-1, keepdims=True)
    var = ((h - mu) ** 2).mean(-1, keepdims=True)
    h = jnp.maximum((h - mu) / jnp.sqrt(var + eps) * p["g1"] + p["beta1"], 0.0)

    s = mm(h, p["w2"]) + p["b2"]
    mu2 = s.mean(-1, keepdims=True)
    var2 = ((s - mu2) ** 2).mean(-1, keepdims=True)
    s = (s - mu2) / jnp.sqrt(var2 + eps) * p["g2"] + p["beta2"]

    av = jnp.maximum(mm(a, p["wa"]) + p["ba"], 0.0)
    sa = jnp.maximum(s + av, 0.0)
    return jnp.squeeze(sa @ p["wq"] + p["bq"])


if __name__ == "__main__":
    fwd = jax.jit(critic_forward)

    # Small shapes consistent with the module: state (B, C, H, W), input_dims = C*H*W.
    B, C, H, W = 2, 4, 4, 4
    input_dims = C * H * W              # 64
    n_actions = 8

    key = jax.random.PRNGKey(0)
    k_state, k_action, k_params, k_params2 = jax.random.split(key, 4)
    state = jax.random.normal(k_state, (B, C, H, W), jnp.float32)
    action = jax.random.normal(k_action, (B, n_actions), jnp.float32)

    # --- config 1: 128-multiple hidden dims ----------------------------------
    params = init_params(k_params, input_dims, 128, 128, n_actions)

    # bf16 MXU operands (default; f32 accumulation + f32 LayerNorm/ReLU).
    packed_bf16 = pack_params(params)                       # pack ONCE, reuse per call
    out_bf16 = jax.block_until_ready(fwd(state, action, packed_bf16))
    ref_bf16 = critic_reference(state, action, params, matmul_dtype=jnp.bfloat16)
    assert out_bf16.shape == (B,), out_bf16.shape
    assert jnp.allclose(out_bf16, ref_bf16, atol=1e-2, rtol=1e-2), (out_bf16, ref_bf16)

    # f32 MXU operands (full-fidelity fallback path).
    packed_f32 = pack_params(params, matmul_dtype=jnp.float32)
    out_f32 = jax.block_until_ready(fwd(state, action, packed_f32))
    ref_f32 = critic_reference(state, action, params)
    assert out_f32.shape == (B,), out_f32.shape
    assert jnp.allclose(out_f32, ref_f32, atol=1e-3, rtol=1e-3), (out_f32, ref_f32)

    # --- config 2: canonical DDPG sizes (400/300) -> exercises the masked-LN
    # path for non-128-multiple hidden dims.
    n_actions2 = 2
    action2 = jax.random.normal(k_action, (B, n_actions2), jnp.float32)
    params2 = init_params(k_params2, input_dims, 400, 300, n_actions2)
    packed2 = pack_params(params2, matmul_dtype=jnp.float32)
    out2 = jax.block_until_ready(fwd(state, action2, packed2))
    ref2 = critic_reference(state, action2, params2)
    assert out2.shape == (B,), out2.shape
    assert jnp.allclose(out2, ref2, atol=1e-3, rtol=1e-3), (out2, ref2)

    print("KERNEL_OK")
</pallas_src>

<mosaic_0001>
module attributes {stable_mosaic.version = 11 : i64} {
  func.func @_critic_kernel(%arg0: i32, %arg1: memref<16x128xbf16, #tpu.memory_space<vmem>>, %arg2: memref<16x128xbf16, #tpu.memory_space<vmem>>, %arg3: memref<384x128xbf16, #tpu.memory_space<vmem>>, %arg4: memref<9x128xf32, #tpu.memory_space<vmem>>, %arg5: memref<1x16xf32, #tpu.memory_space<vmem>>) attributes {dimension_semantics = [#tpu.dimension_semantics<parallel>], iteration_bounds = array<i64: 1>, scalar_prefetch = 0 : i64, scratch_operands = 0 : i64, tpu.core_type = #tpu.core_type<tc>, window_params = [{transform_indices = @transform_0, window_bounds = array<i64: 16, 128>}, {transform_indices = @transform_1, window_bounds = array<i64: 16, 128>}, {pipeline_mode = #tpu.pipeline_mode<synchronous>, transform_indices = @transform_2, window_bounds = array<i64: 384, 128>}, {pipeline_mode = #tpu.pipeline_mode<synchronous>, transform_indices = @transform_3, window_bounds = array<i64: 9, 128>}, {transform_indices = @transform_4, window_bounds = array<i64: 1, 16>}]} {
    %c0 = arith.constant 0 : index
    %c0_0 = arith.constant 0 : index
    %0 = vector.load %arg1[%c0, %c0_0] : memref<16x128xbf16, #tpu.memory_space<vmem>>, vector<16x128xbf16>
    %c0_1 = arith.constant 0 : index
    %c0_2 = arith.constant 0 : index
    %1 = vector.load %arg2[%c0_1, %c0_2] : memref<16x128xbf16, #tpu.memory_space<vmem>>, vector<16x128xbf16>
    %c0_3 = arith.constant 0 : index
    %c0_4 = arith.constant 0 : index
    %2 = vector.load %arg3[%c0_3, %c0_4] : memref<384x128xbf16, #tpu.memory_space<vmem>>, vector<128x128xbf16>
    %c128 = arith.constant 128 : index
    %c0_5 = arith.constant 0 : index
    %3 = vector.load %arg3[%c128, %c0_5] : memref<384x128xbf16, #tpu.memory_space<vmem>>, vector<128x128xbf16>
    %c256 = arith.constant 256 : index
    %c0_6 = arith.constant 0 : index
    %4 = vector.load %arg3[%c256, %c0_6] : memref<384x128xbf16, #tpu.memory_space<vmem>>, vector<128x128xbf16>
    %c0_7 = arith.constant 0 : index
    %c0_8 = arith.constant 0 : index
    %5 = vector.load %arg4[%c0_7, %c0_8] : memref<9x128xf32, #tpu.memory_space<vmem>>, vector<1x128xf32>
    %c1 = arith.constant 1 : index
    %c0_9 = arith.constant 0 : index
    %6 = vector.load %arg4[%c1, %c0_9] : memref<9x128xf32, #tpu.memory_space<vmem>>, vector<1x128xf32>
    %c2 = arith.constant 2 : index
    %c0_10 = arith.constant 0 : index
    %7 = vector.load %arg4[%c2, %c0_10] : memref<9x128xf32, #tpu.memory_space<vmem>>, vector<1x128xf32>
    %c3 = arith.constant 3 : index
    %c0_11 = arith.constant 0 : index
    %8 = vector.load %arg4[%c3, %c0_11] : memref<9x128xf32, #tpu.memory_space<vmem>>, vector<1x128xf32>
    %c4 = arith.constant 4 : index
    %c0_12 = arith.constant 0 : index
    %9 = vector.load %arg4[%c4, %c0_12] : memref<9x128xf32, #tpu.memory_space<vmem>>, vector<1x128xf32>
    %c5 = arith.constant 5 : index
    %c0_13 = arith.constant 0 : index
    %10 = vector.load %arg4[%c5, %c0_13] : memref<9x128xf32, #tpu.memory_space<vmem>>, vector<1x128xf32>
    %c6 = arith.constant 6 : index
    %c0_14 = arith.constant 0 : index
    %11 = vector.load %arg4[%c6, %c0_14] : memref<9x128xf32, #tpu.memory_space<vmem>>, vector<1x128xf32>
    %c7 = arith.constant 7 : index
    %c0_15 = arith.constant 0 : index
    %12 = vector.load %arg4[%c7, %c0_15] : memref<9x128xf32, #tpu.memory_space<vmem>>, vector<1x128xf32>
    %c8 = arith.constant 8 : index
    %c0_16 = arith.constant 0 : index
    %13 = vector.load %arg4[%c8, %c0_16] : memref<9x128xf32, #tpu.memory_space<vmem>>, vector<1x1xf32>
    %cst = arith.constant dense<0.000000e+00> : vector<16x128xf32>
    %14 = tpu.matmul %0, %2, %cst {dimension_numbers = #tpu.dot_dimension_numbers<[1], [0], [0], [1], [0, 0, 1, 1], [], []>} : vector<16x128xbf16>, vector<128x128xbf16>, vector<16x128xf32> -> vector<16x128xf32>
    %15 = vector.broadcast %5 : vector<1x128xf32> to vector<16x128xf32>
    %16 = arith.addf %14, %15 : vector<16x128xf32>
    %cst_17 = arith.constant dense<0.000000e+00> : vector<16xf32>
    %17 = vector.multi_reduction <add>, %16, %cst_17 [1] : vector<16x128xf32> to vector<16xf32>
    %18 = vector.shape_cast %17 : vector<16xf32> to vector<16x1xf32>
    %cst_18 = arith.constant 7.812500e-03 : f32
    %19 = vector.broadcast %cst_18 : f32 to vector<16x1xf32>
    %20 = arith.mulf %18, %19 : vector<16x1xf32>
    %21 = vector.broadcast %20 : vector<16x1xf32> to vector<16x128xf32>
    %22 = arith.subf %16, %21 : vector<16x128xf32>
    %23 = arith.mulf %22, %22 : vector<16x128xf32>
    %cst_19 = arith.constant dense<0.000000e+00> : vector<16xf32>
    %24 = vector.multi_reduction <add>, %23, %cst_19 [1] : vector<16x128xf32> to vector<16xf32>
    %25 = vector.shape_cast %24 : vector<16xf32> to vector<16x1xf32>
    %cst_20 = arith.constant 7.812500e-03 : f32
    %26 = vector.broadcast %cst_20 : f32 to vector<16x1xf32>
    %27 = arith.mulf %25, %26 : vector<16x1xf32>
    %cst_21 = arith.constant 9.99999974E-6 : f32
    %28 = vector.broadcast %cst_21 : f32 to vector<16x1xf32>
    %29 = arith.addf %27, %28 : vector<16x1xf32>
    %30 = math.rsqrt %29 : vector<16x1xf32>
    %31 = vector.broadcast %30 : vector<16x1xf32> to vector<16x128xf32>
    %32 = arith.mulf %22, %31 : vector<16x128xf32>
    %33 = vector.broadcast %6 : vector<1x128xf32> to vector<16x128xf32>
    %34 = arith.mulf %32, %33 : vector<16x128xf32>
    %35 = vector.broadcast %7 : vector<1x128xf32> to vector<16x128xf32>
    %36 = arith.addf %34, %35 : vector<16x128xf32>
    %cst_22 = arith.constant 0.000000e+00 : f32
    %37 = vector.broadcast %cst_22 : f32 to vector<16x128xf32>
    %38 = arith.maximumf %36, %37 : vector<16x128xf32>
    %39 = arith.truncf %38 : vector<16x128xf32> to vector<16x128xbf16>
    %cst_23 = arith.constant dense<0.000000e+00> : vector<16x128xf32>
    %40 = tpu.matmul %39, %3, %cst_23 {dimension_numbers = #tpu.dot_dimension_numbers<[1], [0], [0], [1], [0, 0, 1, 1], [], []>} : vector<16x128xbf16>, vector<128x128xbf16>, vector<16x128xf32> -> vector<16x128xf32>
    %41 = vector.broadcast %8 : vector<1x128xf32> to vector<16x128xf32>
    %42 = arith.addf %40, %41 : vector<16x128xf32>
    %cst_24 = arith.constant dense<0.000000e+00> : vector<16xf32>
    %43 = vector.multi_reduction <add>, %42, %cst_24 [1] : vector<16x128xf32> to vector<16xf32>
    %44 = vector.shape_cast %43 : vector<16xf32> to vector<16x1xf32>
    %cst_25 = arith.constant 7.812500e-03 : f32
    %45 = vector.broadcast %cst_25 : f32 to vector<16x1xf32>
    %46 = arith.mulf %44, %45 : vector<16x1xf32>
    %47 = vector.broadcast %46 : vector<16x1xf32> to vector<16x128xf32>
    %48 = arith.subf %42, %47 : vector<16x128xf32>
    %49 = arith.mulf %48, %48 : vector<16x128xf32>
    %cst_26 = arith.constant dense<0.000000e+00> : vector<16xf32>
    %50 = vector.multi_reduction <add>, %49, %cst_26 [1] : vector<16x128xf32> to vector<16xf32>
    %51 = vector.shape_cast %50 : vector<16xf32> to vector<16x1xf32>
    %cst_27 = arith.constant 7.812500e-03 : f32
    %52 = vector.broadcast %cst_27 : f32 to vector<16x1xf32>
    %53 = arith.mulf %51, %52 : vector<16x1xf32>
    %cst_28 = arith.constant 9.99999974E-6 : f32
    %54 = vector.broadcast %cst_28 : f32 to vector<16x1xf32>
    %55 = arith.addf %53, %54 : vector<16x1xf32>
    %56 = math.rsqrt %55 : vector<16x1xf32>
    %57 = vector.broadcast %56 : vector<16x1xf32> to vector<16x128xf32>
    %58 = arith.mulf %48, %57 : vector<16x128xf32>
    %59 = vector.broadcast %9 : vector<1x128xf32> to vector<16x128xf32>
    %60 = arith.mulf %58, %59 : vector<16x128xf32>
    %61 = vector.broadcast %10 : vector<1x128xf32> to vector<16x128xf32>
    %62 = arith.addf %60, %61 : vector<16x128xf32>
    %cst_29 = arith.constant dense<0.000000e+00> : vector<16x128xf32>
    %63 = tpu.matmul %1, %4, %cst_29 {dimension_numbers = #tpu.dot_dimension_numbers<[1], [0], [0], [1], [0, 0, 1, 1], [], []>} : vector<16x128xbf16>, vector<128x128xbf16>, vector<16x128xf32> -> vector<16x128xf32>
    %64 = vector.broadcast %11 : vector<1x128xf32> to vector<16x128xf32>
    %65 = arith.addf %63, %64 : vector<16x128xf32>
    %cst_30 = arith.constant 0.000000e+00 : f32
    %66 = vector.broadcast %cst_30 : f32 to vector<16x128xf32>
    %67 = arith.maximumf %65, %66 : vector<16x128xf32>
    %68 = arith.addf %62, %67 : vector<16x128xf32>
    %cst_31 = arith.constant 0.000000e+00 : f32
    %69 = vector.broadcast %cst_31 : f32 to vector<16x128xf32>
    %70 = arith.maximumf %68, %69 : vector<16x128xf32>
    %71 = vector.broadcast %12 : vector<1x128xf32> to vector<16x128xf32>
    %72 = arith.mulf %70, %71 : vector<16x128xf32>
    %cst_32 = arith.constant dense<0.000000e+00> : vector<16xf32>
    %73 = vector.multi_reduction <add>, %72, %cst_32 [1] : vector<16x128xf32> to vector<16xf32>
    %74 = vector.shape_cast %73 : vector<16xf32> to vector<1x16xf32>
    %75 = vector.broadcast %13 : vector<1x1xf32> to vector<1x16xf32>
    %76 = arith.addf %74, %75 : vector<1x16xf32>
    %c0_33 = arith.constant 0 : index
    %c0_34 = arith.constant 0 : index
    %77 = vector.load %arg5[%c0_33, %c0_34] : memref<1x16xf32, #tpu.memory_space<vmem>>, vector<1x16xf32>
    tpu.vector_store %arg5[%c0_33, %c0_34], %76 {strides = array<i32>} : memref<1x16xf32, #tpu.memory_space<vmem>>, vector<1x16xf32>,
    return
  }
  func.func @transform_0(%arg0: i32) -> (i32, i32) {
    %c0_i32 = arith.constant 0 : i32
    %c0_i32_0 = arith.constant 0 : i32
    return %arg0, %c0_i32 : i32, i32
  }
  func.func @transform_1(%arg0: i32) -> (i32, i32) {
    %c0_i32 = arith.constant 0 : i32
    %c0_i32_0 = arith.constant 0 : i32
    return %arg0, %c0_i32 : i32, i32
  }
  func.func @transform_2(%arg0: i32) -> (i32, i32) {
    %c0_i32 = arith.constant 0 : i32
    %c0_i32_0 = arith.constant 0 : i32
    %c0_i32_1 = arith.constant 0 : i32
    return %c0_i32, %c0_i32_0 : i32, i32
  }
  func.func @transform_3(%arg0: i32) -> (i32, i32) {
    %c0_i32 = arith.constant 0 : i32
    %c0_i32_0 = arith.constant 0 : i32
    %c0_i32_1 = arith.constant 0 : i32
    return %c0_i32, %c0_i32_0 : i32, i32
  }
  func.func @transform_4(%arg0: i32) -> (i32, i32) {
    %c0_i32 = arith.constant 0 : i32
    %c0_i32_0 = arith.constant 0 : i32
    return %c0_i32, %arg0 : i32, i32
  }
}

</mosaic_0001>

<llo_original>
// kernel: critic_forward.1
$region0: #{critic_forward.1}
  #allocation0 [shape = 'u32[]', space=smem, size = 0x4, offset = 0x4, fixed_abs, tag = 'smem constant byte address 0x4 - core index']
  #allocation1 [shape = 'u32[72,128]{1,0:T(1,128)}', space=vmem, size = 0x9000, scoped, tag = 'internal scratch']
  %s0 = inlined_call_operand.vmem [shape: bf16[16,128], index: 0, kind: input, shape index: {}]
  %s1 = inlined_call_operand.vmem [shape: bf16[16,128], index: 1, kind: input, shape index: {}]
  %s2 = inlined_call_operand.hbm [shape: bf16[384,128], index: 2, kind: input, shape index: {}]
  %s3 = inlined_call_operand.vmem [shape: f32[9,128], index: 3, kind: input, shape index: {}]
  %s4 = inlined_call_operand.vmem [shape: f32[1,16], index: 4, kind: output, shape index: {}]
  %s5 = sld [smem:[#allocation0]]
  $region30: #{critic_forward.1} parent=0
    _
  %s7 = ssub.s32 1, %s5
  %s8 = scalar_select 0, %s7, %s5
  $region1: #{critic_forward.1} parent=0
    #allocation2 [shape = 'u8[98304]{0}', space=vmem, size = 0x18000, scoped, tag = 'input window, operand 2, single buffered']
    #allocation3 [shape = 's32[1]{0}', space=sflag, size = 0x4, scoped, tag = 'scoped memory for critic_forward.1']
    %9 = vsyncpa [#allocation3], 0
    // Predicated region
    $region2: #{critic_forward.1} parent=1 // pred_check
      _
    $region3: #{critic_forward.1} parent=1 // pred_check_branch
      %11 = sbr.rel (0) target = $region5
    $region4: #{critic_forward.1} parent=1 // pred_region
      _
    $region5: #{critic_forward.1} parent=1 // pred_fallthru
      _
    // Predicated region
    $region6: #{critic_forward.1} parent=1 // pred_check
      _
    $region7: #{critic_forward.1} parent=1 // pred_check_branch
      %13 = sbr.rel (0) target = $region9
    $region8: #{critic_forward.1} parent=1 // pred_region
      _
    $region9: #{critic_forward.1} parent=1 // pred_fallthru
      _
    // Predicated region
    $region10: #{critic_forward.1} parent=1 // pred_check
      _
    $region11: #{critic_forward.1} parent=1 // pred_check_branch
      %15 = sbr.rel (0) target = $region13
    $region12: #{critic_forward.1} parent=1 // pred_region
      %17 = vsyncadd [#allocation3], 0
      %s18 = sshll.u32 %s2, 4
      %s19 = int_to_ptr.hbm [resolvable:$true] %s18
      %s20 = sshll.u32 [#allocation2], 4
      %s21 = int_to_ptr.vmem [resolvable:$true] %s20
      %26 = dma.hbm_to_vmem [thread:$0]  %s19, 3072, %s21, [#allocation3], 64, 64, 4
    $region13: #{critic_forward.1} parent=1 // pred_fallthru
      _
    // Predicated region
    $region14: #{critic_forward.1} parent=1 // pred_check
      _
    $region15: #{critic_forward.1} parent=1 // pred_check_branch
      %28 = sbr.rel (0) target = $region17
    $region16: #{critic_forward.1} parent=1 // pred_region
      _
    $region17: #{critic_forward.1} parent=1 // pred_fallthru
      _
    // Predicated region
    $region18: #{critic_forward.1} parent=1 // pred_check
      _
    $region19: #{critic_forward.1} parent=1 // pred_check_branch
      %30 = sbr.rel (0) target = $region21
    $region20: #{critic_forward.1} parent=1 // pred_region
      %32 = dma.done [#allocation3], 3072
    $region21: #{critic_forward.1} parent=1 // pred_fallthru
      _
    %v33 = vld [vmem:[%s0] sm:$0xf]
    %v34 = vld [vmem:[%s0 + $0x4] sm:$0xf]
    %v35 = vld [vmem:[%s1] sm:$0xf]
    %v36 = vld [vmem:[%s1 + $0x4] sm:$0xf]
    %v37 = vld [vmem:[#allocation2] sm:$0xf]
    %v38 = vld [vmem:[#allocation2 + $0x4] sm:$0xf]
    %v39 = vld [vmem:[#allocation2 + $0x8] sm:$0xf]
    %v40 = vld [vmem:[#allocation2 + $0xc] sm:$0xf]
    %v41 = vld [vmem:[#allocation2 + $0x10] sm:$0xf]
    %v42 = vld [vmem:[#allocation2 + $0x14] sm:$0xf]
    %v43 = vld [vmem:[#allocation2 + $0x18] sm:$0xf]
    %v44 = vld [vmem:[#allocation2 + $0x1c] sm:$0xf]
    %v45 = vld [vmem:[#allocation2 + $0x20] sm:$0xf]
    %v46 = vld [vmem:[#allocation2 + $0x24] sm:$0xf]
    %v47 = vld [vmem:[#allocation2 + $0x28] sm:$0xf]
    %v48 = vld [vmem:[#allocation2 + $0x2c] sm:$0xf]
    %v49 = vld [vmem:[#allocation2 + $0x30] sm:$0xf]
    %v50 = vld [vmem:[#allocation2 + $0x34] sm:$0xf]
    %v51 = vld [vmem:[#allocation2 + $0x38] sm:$0xf]
    %v52 = vld [vmem:[#allocation2 + $0x3c] sm:$0xf]
    %v53 = vld [vmem:[#allocation2 + $0x40] sm:$0xf]
    %v54 = vld [vmem:[#allocation2 + $0x44] sm:$0xf]
    %v55 = vld [vmem:[#allocation2 + $0x48] sm:$0xf]
    %v56 = vld [vmem:[#allocation2 + $0x4c] sm:$0xf]
    %v57 = vld [vmem:[#allocation2 + $0x50] sm:$0xf]
    %v58 = vld [vmem:[#allocation2 + $0x54] sm:$0xf]
    %v59 = vld [vmem:[#allocation2 + $0x58] sm:$0xf]
    %v60 = vld [vmem:[#allocation2 + $0x5c] sm:$0xf]
    %v61 = vld [vmem:[#allocation2 + $0x60] sm:$0xf]
    %v62 = vld [vmem:[#allocation2 + $0x64] sm:$0xf]
    %v63 = vld [vmem:[#allocation2 + $0x68] sm:$0xf]
    %v64 = vld [vmem:[#allocation2 + $0x6c] sm:$0xf]
    %v65 = vld [vmem:[#allocation2 + $0x70] sm:$0xf]
    %v66 = vld [vmem:[#allocation2 + $0x74] sm:$0xf]
    %v67 = vld [vmem:[#allocation2 + $0x78] sm:$0xf]
    %v68 = vld [vmem:[#allocation2 + $0x7c] sm:$0xf]
    %v69 = vld [vmem:[#allocation2 + $0x80] sm:$0xf]
    %v70 = vld [vmem:[#allocation2 + $0x84] sm:$0xf]
    %v71 = vld [vmem:[#allocation2 + $0x88] sm:$0xf]
    %v72 = vld [vmem:[#allocation2 + $0x8c] sm:$0xf]
    %v73 = vld [vmem:[#allocation2 + $0x90] sm:$0xf]
    %v74 = vld [vmem:[#allocation2 + $0x94] sm:$0xf]
    %v75 = vld [vmem:[#allocation2 + $0x98] sm:$0xf]
    %v76 = vld [vmem:[#allocation2 + $0x9c] sm:$0xf]
    %v77 = vld [vmem:[#allocation2 + $0xa0] sm:$0xf]
    %v78 = vld [vmem:[#allocation2 + $0xa4] sm:$0xf]
    %v79 = vld [vmem:[#allocation2 + $0xa8] sm:$0xf]
    %v80 = vld [vmem:[#allocation2 + $0xac] sm:$0xf]
    %v81 = vld [vmem:[#allocation2 + $0xb0] sm:$0xf]
    %v82 = vld [vmem:[#allocation2 + $0xb4] sm:$0xf]
    %v83 = vld [vmem:[#allocation2 + $0xb8] sm:$0xf]
    %v84 = vld [vmem:[#allocation2 + $0xbc] sm:$0xf]
    %v85 = vld [vmem:[%s3] sm:$0x1]
    %v86 = vld [vmem:[%s3 + $0x1] sm:$0x1]
    %v87 = vld [vmem:[%s3 + $0x2] sm:$0x1]
    %v88 = vld [vmem:[%s3 + $0x3] sm:$0x1]
    %v89 = vld [vmem:[%s3 + $0x4] sm:$0x1]
    %v90 = vld [vmem:[%s3 + $0x5] sm:$0x1]
    %v91 = vld [vmem:[%s3 + $0x6] sm:$0x1]
    %v92 = vld [vmem:[%s3 + $0x7] sm:$0x1]
    %v93 = vld [vmem:[%s3 + $0x8] sm:$0x1]
    %v94 = vperm.slane %v85, 0
    %v97 = vunpack.c.l.b16 %v33
    %v98 = vunpack.c.l.b16 %v34
    %v99 = vpack.c.b16 %v98, %v97
    %v117 = vunpack.c.l.b16 %v37
    %v118 = vunpack.c.l.b16 %v38
    %v119 = vunpack.c.l.b16 %v39
    %v120 = vunpack.c.l.b16 %v40
    %v121 = vunpack.c.l.b16 %v41
    %v122 = vunpack.c.l.b16 %v42
    %v123 = vunpack.c.l.b16 %v43
    %v124 = vunpack.c.l.b16 %v44
    %v125 = vunpack.c.l.b16 %v45
    %v126 = vunpack.c.l.b16 %v46
    %v127 = vunpack.c.l.b16 %v47
    %v128 = vunpack.c.l.b16 %v48
    %v129 = vunpack.c.l.b16 %v49
    %v130 = vunpack.c.l.b16 %v50
    %v131 = vunpack.c.l.b16 %v51
    %v132 = vunpack.c.l.b16 %v52
    %v133 = vpack.c.b16 %v118, %v117
    %v134 = vpack.c.b16 %v120, %v119
    %v135 = vpack.c.b16 %v122, %v121
    %v136 = vpack.c.b16 %v124, %v123
    %v137 = vpack.c.b16 %v126, %v125
    %v138 = vpack.c.b16 %v128, %v127
    %v139 = vpack.c.b16 %v130, %v129
    %v140 = vpack.c.b16 %v132, %v131
    %149 = vmatpush.bf16.msra.mxu0 %v140
    %150 = vmatpush.bf16.msra.mxu0 %v139
    %151 = vmatpush.bf16.msra.mxu0 %v138
    %152 = vmatpush.bf16.msra.mxu0 %v137
    %153 = vmatpush.bf16.msra.mxu0 %v136
    %154 = vmatpush.bf16.msra.mxu0 %v135
    %155 = vmatpush.bf16.msra.mxu0 %v134
    %156 = vmatpush.bf16.msra.mxu0 %v133
    %157 = vmatmul.bf16.gmra.mxu0 %v99
    %v158 = vpop.f32.mrf.mxu0
    %v159 = vadd.f32 %v94, %v158
    %v160 = vpop.f32.mrf.mxu0
    %v161 = vadd.f32 %v94, %v160
    %162 = vdwg.mxu0
    %163 = vadd.xlane.f32.xlu0 %v159
    %v164 = vpop.xlane.xlu0 %163
    %165 = vadd.xlane.f32.xlu0 %v161
    %v166 = vpop.xlane.xlu0 %165
    %v167 = vmul.f32 %v164, 0.0078125
    %v168 = vmul.f32 %v166, 0.0078125
    %v169 = vsub.f32 %v159, %v167
    %v170 = vsub.f32 %v161, %v168
    %v171 = vmul.f32 %v169, %v169
    %v172 = vmul.f32 %v170, %v170
    %173 = vadd.xlane.f32.xlu0 %v171
    %v174 = vpop.xlane.xlu0 %173
    %175 = vadd.xlane.f32.xlu0 %v172
    %v176 = vpop.xlane.xlu0 %175
    %v177 = vmul.f32 %v174, 0.0078125
    %v178 = vmul.f32 %v176, 0.0078125
    %v179 = vadd.f32 %v177, 1e-05
    %v180 = vadd.f32 %v178, 1e-05
    %v181 = vrsqrt.pop %v179
    %v182 = vmul.f32 %v181, %v179
    %v183 = vmul.f32 %v182, %v181
    %v184 = vmul.f32 0.5, %v183
    %v185 = vsub.f32 1.5, %v184
    %v186 = vmul.f32 %v181, %v185
    %vm187 = vweird.f32 %v179
    %vm188 = vweird.f32 %v181
    %vm189 = vmor %vm187, %vm188
    %v190 = vsel %vm189, %v181, %v186
    %v191 = vrsqrt.pop %v180
    %v192 = vmul.f32 %v191, %v180
    %v193 = vmul.f32 %v192, %v191
    %v194 = vmul.f32 0.5, %v193
    %v195 = vsub.f32 1.5, %v194
    %v196 = vmul.f32 %v191, %v195
    %vm197 = vweird.f32 %v180
    %vm198 = vweird.f32 %v191
    %vm199 = vmor %vm197, %vm198
    %v200 = vsel %vm199, %v191, %v196
    %v201 = vmul.f32 %v169, %v190
    %v202 = vmul.f32 %v170, %v200
    %v203 = vperm.slane %v86, 0
    %v204 = vmul.f32 %v201, %v203
    %v205 = vmul.f32 %v202, %v203
    %v206 = vperm.slane %v87, 0
    %v207 = vadd.f32 %v204, %v206
    %v208 = vadd.f32 %v205, %v206
    %v209 = vmax.f32 %v207, 0.0
    %v210 = vmax.f32 %v208, 0.0
    %v211 = vpack.c.bf16 %v210, %v209
    %v212 = vperm.slane %v88, 0
    %v229 = vunpack.c.l.b16 %v53
    %v230 = vunpack.c.l.b16 %v54
    %v231 = vunpack.c.l.b16 %v55
    %v232 = vunpack.c.l.b16 %v56
    %v233 = vunpack.c.l.b16 %v57
    %v234 = vunpack.c.l.b16 %v58
    %v235 = vunpack.c.l.b16 %v59
    %v236 = vunpack.c.l.b16 %v60
    %v237 = vunpack.c.l.b16 %v61
    %v238 = vunpack.c.l.b16 %v62
    %v239 = vunpack.c.l.b16 %v63
    %v240 = vunpack.c.l.b16 %v64
    %v241 = vunpack.c.l.b16 %v65
    %v242 = vunpack.c.l.b16 %v66
    %v243 = vunpack.c.l.b16 %v67
    %v244 = vunpack.c.l.b16 %v68
    %v245 = vpack.c.b16 %v230, %v229
    %v246 = vpack.c.b16 %v232, %v231
    %v247 = vpack.c.b16 %v234, %v233
    %v248 = vpack.c.b16 %v236, %v235
    %v249 = vpack.c.b16 %v238, %v237
    %v250 = vpack.c.b16 %v240, %v239
    %v251 = vpack.c.b16 %v242, %v241
    %v252 = vpack.c.b16 %v244, %v243
    %261 = vmatpush.bf16.msra.mxu0 %v252
    %262 = vmatpush.bf16.msra.mxu0 %v251
    %263 = vmatpush.bf16.msra.mxu0 %v250
    %264 = vmatpush.bf16.msra.mxu0 %v249
    %265 = vmatpush.bf16.msra.mxu0 %v248
    %266 = vmatpush.bf16.msra.mxu0 %v247
    %267 = vmatpush.bf16.msra.mxu0 %v246
    %268 = vmatpush.bf16.msra.mxu0 %v245
    %269 = vmatmul.bf16.gmra.mxu0 %v211
    %v270 = vpop.f32.mrf.mxu0
    %v271 = vadd.f32 %v212, %v270
    %v272 = vpop.f32.mrf.mxu0
    %v273 = vadd.f32 %v212, %v272
    %274 = vdwg.mxu0
    %275 = vadd.xlane.f32.xlu0 %v271
    %v276 = vpop.xlane.xlu0 %275
    %277 = vadd.xlane.f32.xlu0 %v273
    %v278 = vpop.xlane.xlu0 %277
    %v279 = vmul.f32 %v276, 0.0078125
    %v280 = vmul.f32 %v278, 0.0078125
    %v281 = vsub.f32 %v271, %v279
    %v282 = vsub.f32 %v273, %v280
    %v283 = vmul.f32 %v281, %v281
    %v284 = vmul.f32 %v282, %v282
    %285 = vadd.xlane.f32.xlu0 %v283
    %v286 = vpop.xlane.xlu0 %285
    %287 = vadd.xlane.f32.xlu0 %v284
    %v288 = vpop.xlane.xlu0 %287
    %v289 = vmul.f32 %v286, 0.0078125
    %v290 = vmul.f32 %v288, 0.0078125
    %v291 = vadd.f32 %v289, 1e-05
    %v292 = vadd.f32 %v290, 1e-05
    %v293 = vrsqrt.pop %v291
    %v294 = vmul.f32 %v293, %v291
    %v295 = vmul.f32 %v294, %v293
    %v296 = vmul.f32 0.5, %v295
    %v297 = vsub.f32 1.5, %v296
    %v298 = vmul.f32 %v293, %v297
    %vm299 = vweird.f32 %v291
    %vm300 = vweird.f32 %v293
    %vm301 = vmor %vm299, %vm300
    %v302 = vsel %vm301, %v293, %v298
    %v303 = vrsqrt.pop %v292
    %v304 = vmul.f32 %v303, %v292
    %v305 = vmul.f32 %v304, %v303
    %v306 = vmul.f32 0.5, %v305
    %v307 = vsub.f32 1.5, %v306
    %v308 = vmul.f32 %v303, %v307
    %vm309 = vweird.f32 %v292
    %vm310 = vweird.f32 %v303
    %vm311 = vmor %vm309, %vm310
    %v312 = vsel %vm311, %v303, %v308
    %v313 = vmul.f32 %v281, %v302
    %v314 = vmul.f32 %v282, %v312
    %v315 = vperm.slane %v89, 0
    %v316 = vmul.f32 %v313, %v315
    %v317 = vmul.f32 %v314, %v315
    %v318 = vperm.slane %v90, 0
    %v319 = vadd.f32 %v316, %v318
    %v320 = vadd.f32 %v317, %v318
    %v321 = vperm.slane %v91, 0
    %v324 = vunpack.c.l.b16 %v35
    %v325 = vunpack.c.l.b16 %v36
    %v326 = vpack.c.b16 %v325, %v324
    %v344 = vunpack.c.l.b16 %v69
    %v345 = vunpack.c.l.b16 %v70
    %v346 = vunpack.c.l.b16 %v71
    %v347 = vunpack.c.l.b16 %v72
    %v348 = vunpack.c.l.b16 %v73
    %v349 = vunpack.c.l.b16 %v74
    %v350 = vunpack.c.l.b16 %v75
    %v351 = vunpack.c.l.b16 %v76
    %v352 = vunpack.c.l.b16 %v77
    %v353 = vunpack.c.l.b16 %v78
    %v354 = vunpack.c.l.b16 %v79
    %v355 = vunpack.c.l.b16 %v80
    %v356 = vunpack.c.l.b16 %v81
    %v357 = vunpack.c.l.b16 %v82
    %v358 = vunpack.c.l.b16 %v83
    %v359 = vunpack.c.l.b16 %v84
    %v360 = vpack.c.b16 %v345, %v344
    %v361 = vpack.c.b16 %v347, %v346
    %v362 = vpack.c.b16 %v349, %v348
    %v363 = vpack.c.b16 %v351, %v350
    %v364 = vpack.c.b16 %v353, %v352
    %v365 = vpack.c.b16 %v355, %v354
    %v366 = vpack.c.b16 %v357, %v356
    %v367 = vpack.c.b16 %v359, %v358
    %376 = vmatpush.bf16.msra.mxu0 %v367
    %377 = vmatpush.bf16.msra.mxu0 %v366
    %378 = vmatpush.bf16.msra.mxu0 %v365
    %379 = vmatpush.bf16.msra.mxu0 %v364
    %380 = vmatpush.bf16.msra.mxu0 %v363
    %381 = vmatpush.bf16.msra.mxu0 %v362
    %382 = vmatpush.bf16.msra.mxu0 %v361
    %383 = vmatpush.bf16.msra.mxu0 %v360
    %384 = vmatmul.bf16.gmra.mxu0 %v326
    %v385 = vpop.f32.mrf.mxu0
    %v386 = vadd.f32 %v321, %v385
    %v387 = vpop.f32.mrf.mxu0
    %v388 = vadd.f32 %v321, %v387
    %389 = vdwg.mxu0
    %v390 = vmax.f32 %v386, 0.0
    %v391 = vmax.f32 %v388, 0.0
    %v392 = vadd.f32 %v319, %v390
    %v393 = vadd.f32 %v320, %v391
    %v394 = vmax.f32 %v392, 0.0
    %v395 = vmax.f32 %v393, 0.0
    %v396 = vperm.slane %v92, 0
    %v397 = vmul.f32 %v394, %v396
    %v398 = vmul.f32 %v395, %v396
    %399 = vadd.xlane.f32.xlu0 %v397
    %v400 = vpop.xlane.xlu0 %399
    %401 = vadd.xlane.f32.xlu0 %v398
    %v402 = vpop.xlane.xlu0 %401
    %404 = vset.pattern.permute.xlu0 0
    %405 = vperm.xlu0 %404, %v93
    %v406 = vpop.permute.xlu0 %405
    %v407 = vperm.slane %v406, 0
    %v409 = vadd.f32 %v400, %v407
    %v410 = vadd.f32 %v402, %v407
    %413 = vset.pattern.permute.xlu0 0
    %414 = vperm.xlu0 %413, %v409
    %v415 = vpop.permute.xlu0 %414
    %416 = vset.pattern.permute.xlu0 0
    %417 = vperm.xlu0 %416, %v410
    %v418 = vpop.permute.xlu0 %417
    %v419 = vlaneseq
    %v420 = vand.u32 %v419, 127
    %v421 = vperm.slane %v415, %v420
    %v422 = vadd.s32 %v420, 4294967288
    %v423 = vperm.slane %v418, %v422
    %vm424 = vcmask 130112
    %v425 = vsel %vm424, %v423, %v421
    %vm427 = vcmask 122880
    %428 = vst.msk [vmem:[%s4] sm:$0x1] %vm427, %v425
    // Predicated region
    $region22: #{critic_forward.1} parent=1 // pred_check
      _
    $region23: #{critic_forward.1} parent=1 // pred_check_branch
      %430 = sbr.rel (0) target = $region25
    $region24: #{critic_forward.1} parent=1 // pred_region
      _
    $region25: #{critic_forward.1} parent=1 // pred_fallthru
      _
    // Predicated region
    $region26: #{critic_forward.1} parent=1 // pred_check
      _
    $region27: #{critic_forward.1} parent=1 // pred_check_branch
      %432 = sbr.rel (0) target = $region29
    $region28: #{critic_forward.1} parent=1 // pred_region
      _
    $region29: #{critic_forward.1} parent=1 // pred_fallthru
      _
    %433 = vsyncpa [#allocation3], 1

</llo_original>
